<compile_context>
chip_gen: v5e
topology: v5e:2x2
jax: 0.10.0
libtpu: 0.0.40
codegen_flags: <defaults>
</compile_context>

<pallas_src>
import functools

import numpy as np
import jax
import jax.numpy as jnp
from jax.experimental import pallas as pl
from jax.experimental.pallas import tpu as pltpu


# ConvTranspose(k=3, s=2, p=1, output_padding=1) per-axis polyphase taps:
#   even output phase: y[2m]   = w[1] * x[m]
#   odd  output phase: y[2m+1] = w[0] * x[m+1] + w[2] * x[m]   (x right-padded by 1)
# _KIDX[phase][input_offset] -> kernel tap index (None = no tap).
_KIDX = ((1, None),
         (2, 0))


def _deconv_kernel(x_ref, w00_ref, w01_ref, w10_ref, w11_ref, bias_ref, out_ref):
    # x_ref   : (Dp, Hp, Wp*Cin)  right-padded channels-last input (one batch),
    #                             (W, Cin) fused onto the lane axis.
    # wXY_ref : (Wp*Cin, k*L)     banded weights for the input patch shifted by
    #                             (X, Y) on (d, h); k = #phases using that patch.
    # bias_ref: (1, L)            bias in fused (w, w-phase, cout) lane order.
    # out_ref : (D, 2, H, 2*L)    (d, d-phase, h, (h-phase, w, w-phase, cout)).
    D, _, H, L2 = out_ref.shape
    L = L2 // 2
    Kdim = x_ref.shape[-1]
    DH = D * H

    # The four statically shifted patches — the only distinct inputs any phase uses.
    p00 = x_ref[0:D, 0:H, :].reshape(DH, Kdim)
    p01 = x_ref[0:D, 1:1 + H, :].reshape(DH, Kdim)
    p10 = x_ref[1:1 + D, 0:H, :].reshape(DH, Kdim)
    p11 = x_ref[1:1 + D, 1:1 + H, :].reshape(DH, Kdim)

    # Four fat MXU matmuls; all 9 nonzero (kd, kh) bands appear exactly once.
    m00 = jnp.dot(p00, w00_ref[...], preferred_element_type=jnp.float32)  # (DH, 4L)
    m01 = jnp.dot(p01, w01_ref[...], preferred_element_type=jnp.float32)  # (DH, 2L)
    m10 = jnp.dot(p10, w10_ref[...], preferred_element_type=jnp.float32)  # (DH, 2L)
    m11 = jnp.dot(p11, w11_ref[...], preferred_element_type=jnp.float32)  # (DH,  L)

    # Recombine per output phase (pd, ph); all lane slices are vreg-aligned.
    acc00 = m00[:, 0 * L:1 * L]
    acc01 = m00[:, 1 * L:2 * L] + m01[:, 0 * L:1 * L]
    acc10 = m00[:, 2 * L:3 * L] + m10[:, 0 * L:1 * L]
    acc11 = m00[:, 3 * L:4 * L] + m01[:, 1 * L:2 * L] + m10[:, 1 * L:2 * L] + m11

    bias = bias_ref[...]                                    # (1, L)
    dt = out_ref.dtype

    def store(acc, pd, ph):
        val = jnp.maximum(acc + bias, 0.0).astype(dt).reshape(D, 1, H, L)
        out_ref[:, pd:pd + 1, :, ph * L:(ph + 1) * L] = val

    store(acc00, 0, 0)
    store(acc01, 0, 1)
    store(acc10, 1, 0)
    store(acc11, 1, 1)


def _band(w, kd, kh, W):
    """Banded weight for a fixed (kd, kh) tap: maps fused (Wp, Cin) input lanes
    to fused (W, w-phase, Cout) output lanes, folding in both W-axis taps."""
    Cin, Cout = w.shape[0], w.shape[1]
    Wp = W + 1
    blk = jnp.zeros((Wp, Cin, W, 2, Cout), dtype=w.dtype)
    for pw in range(2):
        for ow in range(2):
            kw = _KIDX[pw][ow]
            if kw is None:
                continue
            sel = np.zeros((Wp, W), dtype=np.float32)       # sel[q+ow, q] = 1
            sel[np.arange(W) + ow, np.arange(W)] = 1.0
            contrib = (jnp.asarray(sel)[:, None, :, None]
                       * w[:, :, kd, kh, kw][None, :, None, :])  # (Wp,Cin,W,Cout)
            blk = blk.at[:, :, :, pw, :].add(contrib)
    return blk.reshape(Wp * Cin, W * 2 * Cout)


def _build_patch_weights(w, W):
    """w: (Cin, Cout, 3, 3, 3) ConvTranspose3d weight.
    Returns the banded weights grouped by the (d, h) input shift they consume;
    output lanes are concatenated per phase in the order the kernel slices them."""
    b = lambda kd, kh: _band(w, kd, kh, W)
    w00 = jnp.concatenate([b(1, 1), b(1, 2), b(2, 1), b(2, 2)], axis=1)  # phases (0,0),(0,1),(1,0),(1,1)
    w01 = jnp.concatenate([b(1, 0), b(2, 0)], axis=1)                    # phases (0,1),(1,1)
    w10 = jnp.concatenate([b(0, 1), b(0, 2)], axis=1)                    # phases (1,0),(1,1)
    w11 = b(0, 0)                                                        # phase  (1,1)
    return w00, w01, w10, w11


@functools.partial(jax.jit, static_argnames=("stride", "padding", "output_padding"))
def deconv3d_block(x, w, b, *, stride=2, padding=1, output_padding=1):
    """x: (N, Cin, D, H, W); w: (Cin, Cout, K, K, K) [ConvTranspose3d layout];
    b: (Cout,).  Returns (N, Cout, 2D, 2H, 2W) = ConvTranspose3d + ReLU."""
    N, Cin, D, H, W = x.shape
    Cout, K = w.shape[1], w.shape[2]
    if not (stride == 2 and padding == 1 and output_padding == 1 and K == 3):
        raise NotImplementedError("polyphase kernel assumes k=3, s=2, p=1, op=1")
    # NOTE: the W-axis band has density ~2/(W+1); beyond W ~ 32, tile W so weight
    # VMEM / MXU work stays near the true FLOP count.

    Dp, Hp, Wp = D + 1, H + 1, W + 1
    Kdim = Wp * Cin
    L = 2 * W * Cout          # fused (w, w-phase, cout) output lanes per phase

    # Channels-last, right-pad each spatial dim by 1 (the x[i+1] odd-phase tap),
    # fuse (W, Cin) onto the lane axis.
    xl = jnp.transpose(x, (0, 2, 3, 4, 1))
    xl = jnp.pad(xl, ((0, 0), (0, 1), (0, 1), (0, 1), (0, 0)))
    xf = xl.reshape(N, Dp, Hp, Kdim)

    w00, w01, w10, w11 = _build_patch_weights(w, W)
    bias_lane = jnp.tile(b, 2 * W).reshape(1, L)

    out_p = pl.pallas_call(
        _deconv_kernel,
        out_shape=jax.ShapeDtypeStruct((N, D, 2, H, 2 * L), x.dtype),
        grid=(N,),
        in_specs=[
            pl.BlockSpec((None, Dp, Hp, Kdim), lambda n: (n, 0, 0, 0)),
            # Weights / bias: grid-invariant blocks -> DMA'd once, VMEM-resident.
            pl.BlockSpec((Kdim, 4 * L), lambda n: (0, 0)),
            pl.BlockSpec((Kdim, 2 * L), lambda n: (0, 0)),
            pl.BlockSpec((Kdim, 2 * L), lambda n: (0, 0)),
            pl.BlockSpec((Kdim, 1 * L), lambda n: (0, 0)),
            pl.BlockSpec((1, L), lambda n: (0, 0)),
        ],
        out_specs=pl.BlockSpec((None, D, 2, H, 2 * L), lambda n: (n, 0, 0, 0, 0)),
        compiler_params=pltpu.CompilerParams(
            dimension_semantics=("parallel",)),
    )(xf, w00, w01, w10, w11, bias_lane)

    # (n, d, pd, h, (ph, w, pw, co)) -> dense (N, 2D, 2H, 2W, Cout): the phase
    # interleave is a pure contiguous reshape; only the NCDHW transpose remains.
    y = out_p.reshape(N, 2 * D, 2 * H, 2 * W, Cout)
    return jnp.transpose(y, (0, 4, 1, 2, 3))


def _ref_forward(x, w, b, *, stride=2, padding=1, output_padding=1):
    """Pure-JAX reference matching torch.nn.ConvTranspose3d + ReLU."""
    K = w.shape[2]
    rhs = jnp.flip(w, axis=(2, 3, 4))                 # (Cin, Cout, K, K, K)
    rhs = jnp.transpose(rhs, (1, 0, 2, 3, 4))         # (Cout, Cin, K, K, K)
    lo = K - 1 - padding
    hi = K - 1 - padding + output_padding
    y = jax.lax.conv_general_dilated(
        x, rhs,
        window_strides=(1, 1, 1),
        padding=[(lo, hi)] * 3,
        lhs_dilation=(stride, stride, stride),
        dimension_numbers=("NCDHW", "OIDHW", "NCDHW"),
    )
    y = y + b[None, :, None, None, None]
    return jnp.maximum(y, 0.0)


if __name__ == "__main__":
    # Small shapes consistent with the module: batch=2, in_feat=4, out_feat=8,
    # spatial 8^3 -> output spatial 16^3 (per-phase fused lanes L = 2*8*8 = 128).
    N, Cin, Cout, D = 2, 4, 8, 8
    key = jax.random.PRNGKey(0)
    kx, kw, kb = jax.random.split(key, 3)

    x = jax.random.normal(kx, (N, Cin, D, D, D), dtype=jnp.float32)
    # ConvTranspose3d weight: (in_feat, out_feat, K, K, K); bias: (out_feat,)
    w = 0.1 * jax.random.normal(kw, (Cin, Cout, 3, 3, 3), dtype=jnp.float32)
    b = 0.05 * jax.random.normal(kb, (Cout,), dtype=jnp.float32)

    out = jax.block_until_ready(deconv3d_block(x, w, b))
    ref = jax.block_until_ready(_ref_forward(x, w, b))

    assert out.shape == (N, Cout, 2 * D, 2 * D, 2 * D), out.shape
    np.testing.assert_allclose(np.asarray(out), np.asarray(ref), rtol=2e-4, atol=2e-4)

    print("KERNEL_OK")
</pallas_src>

<mosaic_0001>
module attributes {stable_mosaic.version = 11 : i64} {
  func.func @_deconv_kernel(%arg0: i32, %arg1: memref<1x9x9x36xf32, #tpu.memory_space<vmem>>, %arg2: memref<36x512xf32, #tpu.memory_space<vmem>>, %arg3: memref<36x256xf32, #tpu.memory_space<vmem>>, %arg4: memref<36x256xf32, #tpu.memory_space<vmem>>, %arg5: memref<36x128xf32, #tpu.memory_space<vmem>>, %arg6: memref<1x128xf32, #tpu.memory_space<vmem>>, %arg7: memref<1x8x2x8x256xf32, #tpu.memory_space<vmem>>) attributes {dimension_semantics = [#tpu.dimension_semantics<parallel>], iteration_bounds = array<i64: 2>, scalar_prefetch = 0 : i64, scratch_operands = 0 : i64, tpu.core_type = #tpu.core_type<tc>, window_params = [{transform_indices = @transform_0, window_bounds = array<i64: 1, 9, 9, 36>}, {pipeline_mode = #tpu.pipeline_mode<synchronous>, transform_indices = @transform_1, window_bounds = array<i64: 36, 512>}, {pipeline_mode = #tpu.pipeline_mode<synchronous>, transform_indices = @transform_2, window_bounds = array<i64: 36, 256>}, {pipeline_mode = #tpu.pipeline_mode<synchronous>, transform_indices = @transform_3, window_bounds = array<i64: 36, 256>}, {pipeline_mode = #tpu.pipeline_mode<synchronous>, transform_indices = @transform_4, window_bounds = array<i64: 36, 128>}, {pipeline_mode = #tpu.pipeline_mode<synchronous>, transform_indices = @transform_5, window_bounds = array<i64: 1, 128>}, {transform_indices = @transform_6, window_bounds = array<i64: 1, 8, 2, 8, 256>}]} {
    %c0 = arith.constant 0 : index
    %c0_0 = arith.constant 0 : index
    %c0_1 = arith.constant 0 : index
    %c0_2 = arith.constant 0 : index
    %0 = vector.load %arg1[%c0, %c0_0, %c0_1, %c0_2] : memref<1x9x9x36xf32, #tpu.memory_space<vmem>>, vector<1x8x8x36xf32>
    %1 = vector.shape_cast %0 : vector<1x8x8x36xf32> to vector<8x8x36xf32>
    %2 = vector.shape_cast %1 : vector<8x8x36xf32> to vector<64x36xf32>
    %c0_3 = arith.constant 0 : index
    %c0_4 = arith.constant 0 : index
    %c1 = arith.constant 1 : index
    %c0_5 = arith.constant 0 : index
    %3 = vector.load %arg1[%c0_3, %c0_4, %c1, %c0_5] : memref<1x9x9x36xf32, #tpu.memory_space<vmem>>, vector<1x8x8x36xf32>
    %4 = vector.shape_cast %3 : vector<1x8x8x36xf32> to vector<8x8x36xf32>
    %5 = vector.shape_cast %4 : vector<8x8x36xf32> to vector<64x36xf32>
    %c0_6 = arith.constant 0 : index
    %c1_7 = arith.constant 1 : index
    %c0_8 = arith.constant 0 : index
    %c0_9 = arith.constant 0 : index
    %6 = vector.load %arg1[%c0_6, %c1_7, %c0_8, %c0_9] : memref<1x9x9x36xf32, #tpu.memory_space<vmem>>, vector<1x8x8x36xf32>
    %7 = vector.shape_cast %6 : vector<1x8x8x36xf32> to vector<8x8x36xf32>
    %8 = vector.shape_cast %7 : vector<8x8x36xf32> to vector<64x36xf32>
    %c0_10 = arith.constant 0 : index
    %c1_11 = arith.constant 1 : index
    %c1_12 = arith.constant 1 : index
    %c0_13 = arith.constant 0 : index
    %9 = vector.load %arg1[%c0_10, %c1_11, %c1_12, %c0_13] : memref<1x9x9x36xf32, #tpu.memory_space<vmem>>, vector<1x8x8x36xf32>
    %10 = vector.shape_cast %9 : vector<1x8x8x36xf32> to vector<8x8x36xf32>
    %11 = vector.shape_cast %10 : vector<8x8x36xf32> to vector<64x36xf32>
    %c0_14 = arith.constant 0 : index
    %c0_15 = arith.constant 0 : index
    %12 = vector.load %arg2[%c0_14, %c0_15] : memref<36x512xf32, #tpu.memory_space<vmem>>, vector<36x512xf32>
    %cst = arith.constant dense<0.000000e+00> : vector<64x512xf32>
    %13 = tpu.matmul %2, %12, %cst {dimension_numbers = #tpu.dot_dimension_numbers<[1], [0], [0], [1], [0, 0, 1, 1], [], []>} : vector<64x36xf32>, vector<36x512xf32>, vector<64x512xf32> -> vector<64x512xf32>
    %c0_16 = arith.constant 0 : index
    %c0_17 = arith.constant 0 : index
    %14 = vector.load %arg3[%c0_16, %c0_17] : memref<36x256xf32, #tpu.memory_space<vmem>>, vector<36x256xf32>
    %cst_18 = arith.constant dense<0.000000e+00> : vector<64x256xf32>
    %15 = tpu.matmul %5, %14, %cst_18 {dimension_numbers = #tpu.dot_dimension_numbers<[1], [0], [0], [1], [0, 0, 1, 1], [], []>} : vector<64x36xf32>, vector<36x256xf32>, vector<64x256xf32> -> vector<64x256xf32>
    %c0_19 = arith.constant 0 : index
    %c0_20 = arith.constant 0 : index
    %16 = vector.load %arg4[%c0_19, %c0_20] : memref<36x256xf32, #tpu.memory_space<vmem>>, vector<36x256xf32>
    %cst_21 = arith.constant dense<0.000000e+00> : vector<64x256xf32>
    %17 = tpu.matmul %8, %16, %cst_21 {dimension_numbers = #tpu.dot_dimension_numbers<[1], [0], [0], [1], [0, 0, 1, 1], [], []>} : vector<64x36xf32>, vector<36x256xf32>, vector<64x256xf32> -> vector<64x256xf32>
    %c0_22 = arith.constant 0 : index
    %c0_23 = arith.constant 0 : index
    %18 = vector.load %arg5[%c0_22, %c0_23] : memref<36x128xf32, #tpu.memory_space<vmem>>, vector<36x128xf32>
    %cst_24 = arith.constant dense<0.000000e+00> : vector<64x128xf32>
    %19 = tpu.matmul %11, %18, %cst_24 {dimension_numbers = #tpu.dot_dimension_numbers<[1], [0], [0], [1], [0, 0, 1, 1], [], []>} : vector<64x36xf32>, vector<36x128xf32>, vector<64x128xf32> -> vector<64x128xf32>
    %20 = vector.extract_strided_slice %13 {offsets = [0, 0], sizes = [64, 128], strides = [1, 1]} : vector<64x512xf32> to vector<64x128xf32>
    %21 = vector.extract_strided_slice %13 {offsets = [0, 128], sizes = [64, 128], strides = [1, 1]} : vector<64x512xf32> to vector<64x128xf32>
    %22 = vector.extract_strided_slice %15 {offsets = [0, 0], sizes = [64, 128], strides = [1, 1]} : vector<64x256xf32> to vector<64x128xf32>
    %23 = arith.addf %21, %22 : vector<64x128xf32>
    %24 = vector.extract_strided_slice %13 {offsets = [0, 256], sizes = [64, 128], strides = [1, 1]} : vector<64x512xf32> to vector<64x128xf32>
    %25 = vector.extract_strided_slice %17 {offsets = [0, 0], sizes = [64, 128], strides = [1, 1]} : vector<64x256xf32> to vector<64x128xf32>
    %26 = arith.addf %24, %25 : vector<64x128xf32>
    %27 = vector.extract_strided_slice %13 {offsets = [0, 384], sizes = [64, 128], strides = [1, 1]} : vector<64x512xf32> to vector<64x128xf32>
    %28 = vector.extract_strided_slice %15 {offsets = [0, 128], sizes = [64, 128], strides = [1, 1]} : vector<64x256xf32> to vector<64x128xf32>
    %29 = arith.addf %27, %28 : vector<64x128xf32>
    %30 = vector.extract_strided_slice %17 {offsets = [0, 128], sizes = [64, 128], strides = [1, 1]} : vector<64x256xf32> to vector<64x128xf32>
    %31 = arith.addf %29, %30 : vector<64x128xf32>
    %32 = arith.addf %31, %19 : vector<64x128xf32>
    %c0_25 = arith.constant 0 : index
    %c0_26 = arith.constant 0 : index
    %33 = vector.load %arg6[%c0_25, %c0_26] : memref<1x128xf32, #tpu.memory_space<vmem>>, vector<1x128xf32>
    %34 = vector.broadcast %33 : vector<1x128xf32> to vector<64x128xf32>
    %35 = arith.addf %20, %34 : vector<64x128xf32>
    %cst_27 = arith.constant 0.000000e+00 : f32
    %36 = vector.broadcast %cst_27 : f32 to vector<64x128xf32>
    %37 = arith.maximumf %35, %36 : vector<64x128xf32>
    %38 = vector.shape_cast %37 : vector<64x128xf32> to vector<8x1x8x128xf32>
    %c0_28 = arith.constant 0 : index
    %c0_29 = arith.constant 0 : index
    %c0_30 = arith.constant 0 : index
    %c0_31 = arith.constant 0 : index
    %c0_32 = arith.constant 0 : index
    %39 = vector.load %arg7[%c0_28, %c0_29, %c0_30, %c0_31, %c0_32] : memref<1x8x2x8x256xf32, #tpu.memory_space<vmem>>, vector<1x8x1x8x128xf32>
    %40 = vector.shape_cast %39 : vector<1x8x1x8x128xf32> to vector<8x1x8x128xf32>
    %41 = vector.shape_cast %38 : vector<8x1x8x128xf32> to vector<1x8x1x8x128xf32>
    tpu.vector_store %arg7[%c0_28, %c0_29, %c0_30, %c0_31, %c0_32], %41 {strides = array<i32>} : memref<1x8x2x8x256xf32, #tpu.memory_space<vmem>>, vector<1x8x1x8x128xf32>,
    %42 = vector.broadcast %33 : vector<1x128xf32> to vector<64x128xf32>
    %43 = arith.addf %23, %42 : vector<64x128xf32>
    %cst_33 = arith.constant 0.000000e+00 : f32
    %44 = vector.broadcast %cst_33 : f32 to vector<64x128xf32>
    %45 = arith.maximumf %43, %44 : vector<64x128xf32>
    %46 = vector.shape_cast %45 : vector<64x128xf32> to vector<8x1x8x128xf32>
    %c0_34 = arith.constant 0 : index
    %c0_35 = arith.constant 0 : index
    %c0_36 = arith.constant 0 : index
    %c0_37 = arith.constant 0 : index
    %c128 = arith.constant 128 : index
    %47 = vector.load %arg7[%c0_34, %c0_35, %c0_36, %c0_37, %c128] : memref<1x8x2x8x256xf32, #tpu.memory_space<vmem>>, vector<1x8x1x8x128xf32>
    %48 = vector.shape_cast %47 : vector<1x8x1x8x128xf32> to vector<8x1x8x128xf32>
    %49 = vector.shape_cast %46 : vector<8x1x8x128xf32> to vector<1x8x1x8x128xf32>
    tpu.vector_store %arg7[%c0_34, %c0_35, %c0_36, %c0_37, %c128], %49 {strides = array<i32>} : memref<1x8x2x8x256xf32, #tpu.memory_space<vmem>>, vector<1x8x1x8x128xf32>,
    %50 = vector.broadcast %33 : vector<1x128xf32> to vector<64x128xf32>
    %51 = arith.addf %26, %50 : vector<64x128xf32>
    %cst_38 = arith.constant 0.000000e+00 : f32
    %52 = vector.broadcast %cst_38 : f32 to vector<64x128xf32>
    %53 = arith.maximumf %51, %52 : vector<64x128xf32>
    %54 = vector.shape_cast %53 : vector<64x128xf32> to vector<8x1x8x128xf32>
    %c0_39 = arith.constant 0 : index
    %c0_40 = arith.constant 0 : index
    %c1_41 = arith.constant 1 : index
    %c0_42 = arith.constant 0 : index
    %c0_43 = arith.constant 0 : index
    %55 = vector.load %arg7[%c0_39, %c0_40, %c1_41, %c0_42, %c0_43] : memref<1x8x2x8x256xf32, #tpu.memory_space<vmem>>, vector<1x8x1x8x128xf32>
    %56 = vector.shape_cast %55 : vector<1x8x1x8x128xf32> to vector<8x1x8x128xf32>
    %57 = vector.shape_cast %54 : vector<8x1x8x128xf32> to vector<1x8x1x8x128xf32>
    tpu.vector_store %arg7[%c0_39, %c0_40, %c1_41, %c0_42, %c0_43], %57 {strides = array<i32>} : memref<1x8x2x8x256xf32, #tpu.memory_space<vmem>>, vector<1x8x1x8x128xf32>,
    %58 = vector.broadcast %33 : vector<1x128xf32> to vector<64x128xf32>
    %59 = arith.addf %32, %58 : vector<64x128xf32>
    %cst_44 = arith.constant 0.000000e+00 : f32
    %60 = vector.broadcast %cst_44 : f32 to vector<64x128xf32>
    %61 = arith.maximumf %59, %60 : vector<64x128xf32>
    %62 = vector.shape_cast %61 : vector<64x128xf32> to vector<8x1x8x128xf32>
    %c0_45 = arith.constant 0 : index
    %c0_46 = arith.constant 0 : index
    %c1_47 = arith.constant 1 : index
    %c0_48 = arith.constant 0 : index
    %c128_49 = arith.constant 128 : index
    %63 = vector.load %arg7[%c0_45, %c0_46, %c1_47, %c0_48, %c128_49] : memref<1x8x2x8x256xf32, #tpu.memory_space<vmem>>, vector<1x8x1x8x128xf32>
    %64 = vector.shape_cast %63 : vector<1x8x1x8x128xf32> to vector<8x1x8x128xf32>
    %65 = vector.shape_cast %62 : vector<8x1x8x128xf32> to vector<1x8x1x8x128xf32>
    tpu.vector_store %arg7[%c0_45, %c0_46, %c1_47, %c0_48, %c128_49], %65 {strides = array<i32>} : memref<1x8x2x8x256xf32, #tpu.memory_space<vmem>>, vector<1x8x1x8x128xf32>,
    return
  }
  func.func @transform_0(%arg0: i32) -> (i32, i32, i32, i32) {
    %c0_i32 = arith.constant 0 : i32
    %c0_i32_0 = arith.constant 0 : i32
    %c0_i32_1 = arith.constant 0 : i32
    %c0_i32_2 = arith.constant 0 : i32
    return %arg0, %c0_i32, %c0_i32_0, %c0_i32_1 : i32, i32, i32, i32
  }
  func.func @transform_1(%arg0: i32) -> (i32, i32) {
    %c0_i32 = arith.constant 0 : i32
    %c0_i32_0 = arith.constant 0 : i32
    %c0_i32_1 = arith.constant 0 : i32
    return %c0_i32, %c0_i32_0 : i32, i32
  }
  func.func @transform_2(%arg0: i32) -> (i32, i32) {
    %c0_i32 = arith.constant 0 : i32
    %c0_i32_0 = arith.constant 0 : i32
    %c0_i32_1 = arith.constant 0 : i32
    return %c0_i32, %c0_i32_0 : i32, i32
  }
  func.func @transform_3(%arg0: i32) -> (i32, i32) {
    %c0_i32 = arith.constant 0 : i32
    %c0_i32_0 = arith.constant 0 : i32
    %c0_i32_1 = arith.constant 0 : i32
    return %c0_i32, %c0_i32_0 : i32, i32
  }
  func.func @transform_4(%arg0: i32) -> (i32, i32) {
    %c0_i32 = arith.constant 0 : i32
    %c0_i32_0 = arith.constant 0 : i32
    %c0_i32_1 = arith.constant 0 : i32
    return %c0_i32, %c0_i32_0 : i32, i32
  }
  func.func @transform_5(%arg0: i32) -> (i32, i32) {
    %c0_i32 = arith.constant 0 : i32
    %c0_i32_0 = arith.constant 0 : i32
    %c0_i32_1 = arith.constant 0 : i32
    return %c0_i32, %c0_i32_0 : i32, i32
  }
  func.func @transform_6(%arg0: i32) -> (i32, i32, i32, i32, i32) {
    %c0_i32 = arith.constant 0 : i32
    %c0_i32_0 = arith.constant 0 : i32
    %c0_i32_1 = arith.constant 0 : i32
    %c0_i32_2 = arith.constant 0 : i32
    %c0_i32_3 = arith.constant 0 : i32
    return %arg0, %c0_i32, %c0_i32_0, %c0_i32_1, %c0_i32_2 : i32, i32, i32, i32, i32
  }
}

</mosaic_0001>

<llo_original>
// kernel: tile.9
$region0: #{tile.9}
  %s0 = inlined_call_operand.vmem [shape: f32[16,8], index: 0, kind: input, shape index: {}]
  %s1 = inlined_call_operand.vmem [shape: f32[1,128], index: 1, kind: output, shape index: {}]
  $region1: #{tile.9} parent=0
    #allocation0 [shape = 'u8[4096]{0}', space=vmem, size = 0x1000, scoped, tag = 'scoped mem for output reshape']
    %v2 = vld [vmem:[%s0] sm:$0x1]
    %vm3 = vcmask 64512
    %4 = vst.msk [vmem:[#allocation0] sm:$0x1] %vm3, %v2
    %s5 = scalar_lea.vmem %s0, 15
    %v6 = vld [vmem:[%s5] sm:$0x1]
    %7 = vrot.lane.b32.xlu0 %v6, 120
    %v8 = vpop.permute.xlu0 %7
    %vm9 = vcmask 1048512
    %10 = vst.msk [vmem:[#allocation0] sm:$0x1] %vm9, %v8
    %s11 = scalar_lea.vmem %s0, 14
    %v12 = vld [vmem:[%s11] sm:$0x1]
    %13 = vrot.lane.b32.xlu0 %v12, 112
    %v14 = vpop.permute.xlu0 %13
    %vm15 = vcmask 982912
    %16 = vst.msk [vmem:[#allocation0] sm:$0x1] %vm15, %v14
    %s17 = scalar_lea.vmem %s0, 13
    %v18 = vld [vmem:[%s17] sm:$0x1]
    %19 = vrot.lane.b32.xlu0 %v18, 104
    %v20 = vpop.permute.xlu0 %19
    %vm21 = vcmask 917312
    %22 = vst.msk [vmem:[#allocation0] sm:$0x1] %vm21, %v20
    %s23 = scalar_lea.vmem %s0, 12
    %v24 = vld [vmem:[%s23] sm:$0x1]
    %25 = vrot.lane.b32.xlu0 %v24, 96
    %v26 = vpop.permute.xlu0 %25
    %vm27 = vcmask 851712
    %28 = vst.msk [vmem:[#allocation0] sm:$0x1] %vm27, %v26
    %s29 = scalar_lea.vmem %s0, 11
    %v30 = vld [vmem:[%s29] sm:$0x1]
    %31 = vrot.lane.b32.xlu0 %v30, 88
    %v32 = vpop.permute.xlu0 %31
    %vm33 = vcmask 786112
    %34 = vst.msk [vmem:[#allocation0] sm:$0x1] %vm33, %v32
    %s35 = scalar_lea.vmem %s0, 10
    %v36 = vld [vmem:[%s35] sm:$0x1]
    %37 = vrot.lane.b32.xlu0 %v36, 80
    %v38 = vpop.permute.xlu0 %37
    %vm39 = vcmask 720512
    %40 = vst.msk [vmem:[#allocation0] sm:$0x1] %vm39, %v38
    %s41 = scalar_lea.vmem %s0, 9
    %v42 = vld [vmem:[%s41] sm:$0x1]
    %43 = vrot.lane.b32.xlu0 %v42, 72
    %v44 = vpop.permute.xlu0 %43
    %vm45 = vcmask 654912
    %46 = vst.msk [vmem:[#allocation0] sm:$0x1] %vm45, %v44
    %s47 = scalar_lea.vmem %s0, 8
    %v48 = vld [vmem:[%s47] sm:$0x1]
    %49 = vrot.lane.b32.xlu0 %v48, 64
    %v50 = vpop.permute.xlu0 %49
    %vm51 = vcmask 589312
    %52 = vst.msk [vmem:[#allocation0] sm:$0x1] %vm51, %v50
    %s53 = scalar_lea.vmem %s0, 7
    %v54 = vld [vmem:[%s53] sm:$0x1]
    %55 = vrot.lane.b32.xlu0 %v54, 56
    %v56 = vpop.permute.xlu0 %55
    %vm57 = vcmask 523712
    %58 = vst.msk [vmem:[#allocation0] sm:$0x1] %vm57, %v56
    %s59 = scalar_lea.vmem %s0, 6
    %v60 = vld [vmem:[%s59] sm:$0x1]
    %61 = vrot.lane.b32.xlu0 %v60, 48
    %v62 = vpop.permute.xlu0 %61
    %vm63 = vcmask 458112
    %64 = vst.msk [vmem:[#allocation0] sm:$0x1] %vm63, %v62
    %s65 = scalar_lea.vmem %s0, 5
    %v66 = vld [vmem:[%s65] sm:$0x1]
    %67 = vrot.lane.b32.xlu0 %v66, 40
    %v68 = vpop.permute.xlu0 %67
    %vm69 = vcmask 392512
    %70 = vst.msk [vmem:[#allocation0] sm:$0x1] %vm69, %v68
    %s71 = scalar_lea.vmem %s0, 4
    %v72 = vld [vmem:[%s71] sm:$0x1]
    %73 = vrot.lane.b32.xlu0 %v72, 32
    %v74 = vpop.permute.xlu0 %73
    %vm75 = vcmask 326912
    %76 = vst.msk [vmem:[#allocation0] sm:$0x1] %vm75, %v74
    %s77 = scalar_lea.vmem %s0, 3
    %v78 = vld [vmem:[%s77] sm:$0x1]
    %79 = vrot.lane.b32.xlu0 %v78, 24
    %v80 = vpop.permute.xlu0 %79
    %vm81 = vcmask 261312
    %82 = vst.msk [vmem:[#allocation0] sm:$0x1] %vm81, %v80
    %s83 = scalar_lea.vmem %s0, 2
    %v84 = vld [vmem:[%s83] sm:$0x1]
    %85 = vrot.lane.b32.xlu0 %v84, 16
    %v86 = vpop.permute.xlu0 %85
    %vm87 = vcmask 195712
    %88 = vst.msk [vmem:[#allocation0] sm:$0x1] %vm87, %v86
    %s89 = scalar_lea.vmem %s0, 1
    %v90 = vld [vmem:[%s89] sm:$0x1]
    %91 = vrot.lane.b32.xlu0 %v90, 8
    %v92 = vpop.permute.xlu0 %91
    %vm93 = vcmask 130112
    %94 = vst.msk [vmem:[#allocation0] sm:$0x1] %vm93, %v92
    %s96 = ssub.s32 2, 1
    %v97 = vld [vmem:[#allocation0] sm:%s96]
    %s99 = ssub.s32 2, 1
    %100 = vst [vmem:[%s1] sm:%s99] %v97

// kernel: tile.8
$region0: #{tile.8}
  #allocation2 [shape = 's32[1]{0}', space=sflag, size = 0x4, scoped, tag = 'scoped memory for tile.8']
  %s0 = inlined_call_operand.hbm [shape: f32[8], index: 0, kind: input, shape index: {}]
  %s1 = inlined_call_operand.vmem [shape: f32[16,8], index: 1, kind: output, shape index: {}]
  $region1: #{tile.8} parent=0
    #allocation0 [shape = 'u8[512]{0}', space=vmem, size = 0x400, scoped, tag = 'operand span for operand 0']
    #allocation1 [shape = 's32[1]{0}', space=sflag, size = 0x4, scoped, tag = 'scoped memory for tile.8']
    %2 = vsyncpa [#allocation1], 0
    // Predicated region
    $region2: #{tile.8} parent=1 // pred_check
      _
    $region3: #{tile.8} parent=1 // pred_check_branch
      %4 = sbr.rel (0) target = $region5
    $region4: #{tile.8} parent=1 // pred_region
      %6 = vsyncadd [#allocation1], 0
      %s8 = sshll.u32 %s0, 4
      %s9 = int_to_ptr.hbm [resolvable:$true] %s8
      %s10 = sshll.u32 [#allocation0], 4
      %s11 = int_to_ptr.vmem [resolvable:$true] %s10
      %13 = dma.hbm_to_vmem [thread:$0]  %s9, 16, %s11, [#allocation1]
    $region5: #{tile.8} parent=1 // pred_fallthru
      _
    // Predicated region
    $region6: #{tile.8} parent=1 // pred_check
      _
    $region7: #{tile.8} parent=1 // pred_check_branch
      %15 = sbr.rel (0) target = $region9
    $region8: #{tile.8} parent=1 // pred_region
      %17 = dma.done [#allocation1], 16
    $region9: #{tile.8} parent=1 // pred_fallthru
      _
    %v18 = vld [vmem:[#allocation0] ss:$0 sm:$0xff]
    %19 = vst [vmem:[%s1] sm:$0xff] %v18
    %s20 = scalar_lea.vmem %s1, 8
    %21 = vst [vmem:[%s20] sm:$0xff] %v18
    %22 = vsyncpa [#allocation1], 1

// kernel: deconv3d_block.1
$region0: #{deconv3d_block.1}
  #allocation0 [shape = 'u32[]', space=smem, size = 0x4, offset = 0x4, fixed_abs, tag = 'smem constant byte address 0x4 - core index']
  #allocation1 [shape = 'u32[72,128]{1,0:T(1,128)}', space=vmem, size = 0x9000, scoped, tag = 'internal scratch']
  %s0 = inlined_call_operand.vmem [shape: f32[2,9,9,36], index: 0, kind: input, shape index: {}]
  %s1 = inlined_call_operand.vmem [shape: f32[36,512], index: 1, kind: input, shape index: {}]
  %s2 = inlined_call_operand.vmem [shape: f32[36,256], index: 2, kind: input, shape index: {}]
  %s3 = inlined_call_operand.vmem [shape: f32[36,256], index: 3, kind: input, shape index: {}]
  %s4 = inlined_call_operand.vmem [shape: f32[36,128], index: 4, kind: input, shape index: {}]
  %s5 = inlined_call_operand.vmem [shape: f32[1,128], index: 5, kind: input, shape index: {}]
  %s6 = inlined_call_operand.vmem [shape: f32[2,8,2,8,256], index: 6, kind: output, shape index: {}]
  %s7 = sld [smem:[#allocation0]]
  $region57: #{deconv3d_block.1} parent=0
    _
  %s9 = ssub.s32 1, %s7
  %s10 = scalar_select 0, %s9, %s7
  loop: start=0, step=1, limit=4
  $region2: #{deconv3d_block.1} parent=0 // loop_pre_header
    _
  $region3: #{deconv3d_block.1} parent=0 // loop_header
    %s12 = sphi 0, %s16
    %p13 = scmp.ge.s32.totalorder %s12, 4
    %s22 = sphi 0, %s24
    %s25 = sphi 0, %s22
    %s26 = sphi 0, %s25
    %s42 = sphi 0, %s26
    %s46 = sphi 0, %s46
    %s48 = sphi 0, %s46
    %s49 = sphi 0, %s48
    %s63 = sphi 0, %s49
    %s67 = sphi 0, %s67
    %s69 = sphi 0, %s67
    %s70 = sphi 0, %s69
    %s84 = sphi 0, %s70
    %s88 = sphi 0, %s88
    %s90 = sphi 0, %s88
    %s91 = sphi 0, %s90
    %s105 = sphi 0, %s91
    %s109 = sphi 0, %s109
    %s111 = sphi 0, %s109
    %s112 = sphi 0, %s111
    %s126 = sphi 0, %s112
    %s130 = sphi 0, %s130
    %s132 = sphi 0, %s130
    %s133 = sphi 0, %s132
    %s147 = sphi 0, %s133
    %s153 = sphi 0, %s155
    %s156 = sphi 0, %s153
    %s157 = sphi 0, %s156
    %s173 = sphi 0, %s157
  $region4: #{deconv3d_block.1} parent=0 // loop_header_branch
    %15 = sbr.rel (%p13) target = $region8
  $region5: #{deconv3d_block.1} parent=0 // loop_body
    %s17 = ssub.s32 %s12, 1
    %s18 = ssub.s32 %s12, 2
    %s19 = sadd.s32 %s12, 1
    %s20 = ssub.s32 %s12, %s19
    %p21 = scmp.eq.s32.totalorder %s20, 0
    %s23 = sadd.s32 %s22, 1
    %s24 = scalar_select %p21, %s22, %s23
    %p27 = pneg %p21
    %p28 = scmp.eq.s32.totalorder %s12, 1
    %p29 = por %p27, %p28
    %p30 = scmp.ne.s32.totalorder %s22, %s25
    %p31 = scmp.eq.s32.totalorder %s12, 0
    %p32 = por %p30, %p31
    %p33 = scmp.ne.s32.totalorder %s22, %s25
    %p34 = scmp.eq.s32.totalorder %s17, 1
    %p35 = por %p33, %p34
    %p36 = scmp.ne.s32.totalorder %s25, %s26
    %p37 = scmp.eq.s32.totalorder %s17, 0
    %p38 = por %p36, %p37
    %p39 = scmp.ne.s32.totalorder %s25, %s26
    %p40 = scmp.eq.s32.totalorder %s18, 1
    %p41 = por %p39, %p40
    %p43 = scmp.ne.s32.totalorder %s26, %s42
    %p44 = scmp.eq.s32.totalorder %s18, 0
    %p45 = por %p43, %p44
    %s47 = sadd.s32 %s46, 1
    %p50 = scmp.eq.s32.totalorder %s12, 1
    %p51 = scmp.ne.s32.totalorder %s46, %s48
    %p52 = scmp.eq.s32.totalorder %s12, 0
    %p53 = por %p51, %p52
    %p54 = scmp.ne.s32.totalorder %s46, %s48
    %p55 = scmp.eq.s32.totalorder %s17, 1
    %p56 = por %p54, %p55
    %p57 = scmp.ne.s32.totalorder %s48, %s49
    %p58 = scmp.eq.s32.totalorder %s17, 0
    %p59 = por %p57, %p58
    %p60 = scmp.ne.s32.totalorder %s48, %s49
    %p61 = scmp.eq.s32.totalorder %s18, 1
    %p62 = por %p60, %p61
    %p64 = scmp.ne.s32.totalorder %s49, %s63
    %p65 = scmp.eq.s32.totalorder %s18, 0
    %p66 = por %p64, %p65
    %s68 = sadd.s32 %s67, 1
    %p71 = scmp.eq.s32.totalorder %s12, 1
    %p72 = scmp.ne.s32.totalorder %s67, %s69
    %p73 = scmp.eq.s32.totalorder %s12, 0
    %p74 = por %p72, %p73
    %p75 = scmp.ne.s32.totalorder %s67, %s69
    %p76 = scmp.eq.s32.totalorder %s17, 1
    %p77 = por %p75, %p76
    %p78 = scmp.ne.s32.totalorder %s69, %s70
    %p79 = scmp.eq.s32.totalorder %s17, 0
    %p80 = por %p78, %p79
    %p81 = scmp.ne.s32.totalorder %s69, %s70
    %p82 = scmp.eq.s32.totalorder %s18, 1
    %p83 = por %p81, %p82
    %p85 = scmp.ne.s32.totalorder %s70, %s84
    %p86 = scmp.eq.s32.totalorder %s18, 0
    %p87 = por %p85, %p86
    %s89 = sadd.s32 %s88, 1
    %p92 = scmp.eq.s32.totalorder %s12, 1
    %p93 = scmp.ne.s32.totalorder %s88, %s90
    %p94 = scmp.eq.s32.totalorder %s12, 0
    %p95 = por %p93, %p94
    %p96 = scmp.ne.s32.totalorder %s88, %s90
    %p97 = scmp.eq.s32.totalorder %s17, 1
    %p98 = por %p96, %p97
    %p99 = scmp.ne.s32.totalorder %s90, %s91
    %p100 = scmp.eq.s32.totalorder %s17, 0
    %p101 = por %p99, %p100
    %p102 = scmp.ne.s32.totalorder %s90, %s91
    %p103 = scmp.eq.s32.totalorder %s18, 1
    %p104 = por %p102, %p103
    %p106 = scmp.ne.s32.totalorder %s91, %s105
    %p107 = scmp.eq.s32.totalorder %s18, 0
    %p108 = por %p106, %p107
    %s110 = sadd.s32 %s109, 1
    %p113 = scmp.eq.s32.totalorder %s12, 1
    %p114 = scmp.ne.s32.totalorder %s109, %s111
    %p115 = scmp.eq.s32.totalorder %s12, 0
    %p116 = por %p114, %p115
    %p117 = scmp.ne.s32.totalorder %s109, %s111
    %p118 = scmp.eq.s32.totalorder %s17, 1
    %p119 = por %p117, %p118
    %p120 = scmp.ne.s32.totalorder %s111, %s112
    %p121 = scmp.eq.s32.totalorder %s17, 0
    %p122 = por %p120, %p121
    %p123 = scmp.ne.s32.totalorder %s111, %s112
    %p124 = scmp.eq.s32.totalorder %s18, 1
    %p125 = por %p123, %p124
    %p127 = scmp.ne.s32.totalorder %s112, %s126
    %p128 = scmp.eq.s32.totalorder %s18, 0
    %p129 = por %p127, %p128
    %s131 = sadd.s32 %s130, 1
    %p134 = scmp.eq.s32.totalorder %s12, 1
    %p135 = scmp.ne.s32.totalorder %s130, %s132
    %p136 = scmp.eq.s32.totalorder %s12, 0
    %p137 = por %p135, %p136
    %p138 = scmp.ne.s32.totalorder %s130, %s132
    %p139 = scmp.eq.s32.totalorder %s17, 1
    %p140 = por %p138, %p139
    %p141 = scmp.ne.s32.totalorder %s132, %s133
    %p142 = scmp.eq.s32.totalorder %s17, 0
    %p143 = por %p141, %p142
    %p144 = scmp.ne.s32.totalorder %s132, %s133
    %p145 = scmp.eq.s32.totalorder %s18, 1
    %p146 = por %p144, %p145
    %p148 = scmp.ne.s32.totalorder %s133, %s147
    %p149 = scmp.eq.s32.totalorder %s18, 0
    %p150 = por %p148, %p149
    %s151 = ssub.s32 %s12, %s19
    %p152 = scmp.eq.s32.totalorder %s151, 0
    %s154 = sadd.s32 %s153, 1
    %s155 = scalar_select %p152, %s153, %s154
    %p158 = pneg %p152
    %p159 = scmp.eq.s32.totalorder %s12, 1
    %p160 = por %p158, %p159
    %p161 = scmp.ne.s32.totalorder %s153, %s156
    %p162 = scmp.eq.s32.totalorder %s12, 0
    %p163 = por %p161, %p162
    %p164 = scmp.ne.s32.totalorder %s153, %s156
    %p165 = scmp.eq.s32.totalorder %s17, 1
    %p166 = por %p164, %p165
    %p167 = scmp.ne.s32.totalorder %s156, %s157
    %p168 = scmp.eq.s32.totalorder %s17, 0
    %p169 = por %p167, %p168
    %p170 = scmp.ne.s32.totalorder %s156, %s157
    %p171 = scmp.eq.s32.totalorder %s18, 1
    %p172 = por %p170, %p171
    %p174 = scmp.ne.s32.totalorder %s157, %s173
    %p175 = scmp.eq.s32.totalorder %s18, 0
    %p176 = por %p174, %p175
    %p177 = scmp.le.s32.totalorder 1, %s12
    %p178 = scmp.lt.s32.totalorder %s12, 3
    %p179 = pnand %p177, %p178
    %p180 = pneg %p179
    // Predicated region
    $region9: #{deconv3d_block.1} parent=5 // pred_check
      _
    $region10: #{deconv3d_block.1} parent=5 // pred_check_branch
      %182 = sbr.rel (%p179) target = $region12
    $region11: #{deconv3d_block.1} parent=5 // pred_region
      %s183 = ssub.s32 %s12, 1
      // Predicated region
      $region13: #{deconv3d_block.1} parent=11 // pred_check
        %p184 = pneg %p59
      $region14: #{deconv3d_block.1} parent=11 // pred_check_branch
        %186 = sbr.rel (%p184) target = $region16
      $region15: #{deconv3d_block.1} parent=11 // pred_region
        _
      $region16: #{deconv3d_block.1} parent=11 // pred_fallthru
        _
      // Predicated region
      $region17: #{deconv3d_block.1} parent=11 // pred_check
        %p187 = pneg %p80
      $region18: #{deconv3d_block.1} parent=11 // pred_check_branch
        %189 = sbr.rel (%p187) target = $region20
      $region19: #{deconv3d_block.1} parent=11 // pred_region
        _
      $region20: #{deconv3d_block.1} parent=11 // pred_fallthru
        _
      // Predicated region
      $region21: #{deconv3d_block.1} parent=11 // pred_check
        %p190 = pneg %p101
      $region22: #{deconv3d_block.1} parent=11 // pred_check_branch
        %192 = sbr.rel (%p190) target = $region24
      $region23: #{deconv3d_block.1} parent=11 // pred_region
        _
      $region24: #{deconv3d_block.1} parent=11 // pred_fallthru
        _
      // Predicated region
      $region25: #{deconv3d_block.1} parent=11 // pred_check
        %p193 = pneg %p122
      $region26: #{deconv3d_block.1} parent=11 // pred_check_branch
        %195 = sbr.rel (%p193) target = $region28
      $region27: #{deconv3d_block.1} parent=11 // pred_region
        _
      $region28: #{deconv3d_block.1} parent=11 // pred_fallthru
        _
      // Predicated region
      $region29: #{deconv3d_block.1} parent=11 // pred_check
        %p196 = pneg %p143
      $region30: #{deconv3d_block.1} parent=11 // pred_check_branch
        %198 = sbr.rel (%p196) target = $region32
      $region31: #{deconv3d_block.1} parent=11 // pred_region
        _
      $region32: #{deconv3d_block.1} parent=11 // pred_fallthru
        _
    $region12: #{deconv3d_block.1} parent=5 // pred_fallthru
      _
    %p199 = scmp.lt.s32.totalorder %s12, 2
    // Predicated region
    $region33: #{deconv3d_block.1} parent=5 // pred_check
      %p200 = pneg %p199
    $region34: #{deconv3d_block.1} parent=5 // pred_check_branch
      %202 = sbr.rel (%p200) target = $region36
    $region35: #{deconv3d_block.1} parent=5 // pred_region
      // Predicated region
      $region37: #{deconv3d_block.1} parent=35 // pred_check
        %p203 = pneg %p32
      $region38: #{deconv3d_block.1} parent=35 // pred_check_branch
        %205 = sbr.rel (%p203) target = $region40
      $region39: #{deconv3d_block.1} parent=35 // pred_region
        %p206 = scmp.lt.s32.totalorder %s12, 1
        %s207 = scalar_select %p206, %s12, 1
        %s208 = smul.addr %s207, 18
        %s209 = smul.addr %s208, 8
        %s210 = scalar_lea.vmem %s0, %s209
      $region40: #{deconv3d_block.1} parent=35 // pred_fallthru
        _
    $region36: #{deconv3d_block.1} parent=5 // pred_fallthru
      _
    %p211 = scmp.le.s32.totalorder 1, %s12
    %p212 = scmp.lt.s32.totalorder %s12, 3
    %p213 = pnand %p211, %p212
    %p214 = pneg %p213
    // Predicated region
    $region41: #{deconv3d_block.1} parent=5 // pred_check
      _
    $region42: #{deconv3d_block.1} parent=5 // pred_check_branch
      %216 = sbr.rel (%p213) target = $region44
    $region43: #{deconv3d_block.1} parent=5 // pred_region
      %s217 = ssub.s32 %s12, 1
      %p218 = scmp.lt.s32.totalorder %s17, 1
      %s219 = scalar_select %p218, %s17, 1
      %s220 = smul.addr %s219, 18
      %s221 = smul.addr %s220, 8
      %s222 = scalar_lea.vmem %s0, %s221
      %p223 = pneg %p38
      %p224 = pneg %p35
      %p225 = pneg %p59
      %p226 = pneg %p56
      %p227 = pneg %p80
      %p228 = pneg %p77
      %p229 = pneg %p101
      %p230 = pneg %p98
      %p231 = pneg %p122
      %p232 = pneg %p119
      %p233 = pneg %p143
      %p234 = pneg %p140
      %p235 = pneg %p169
      %p236 = pneg %p166
      %p237 = scmp.lt.s32.totalorder %s17, 1
      %s238 = scalar_select %p237, %s17, 1
      %s239 = smul.addr %s238, 32
      %s240 = smul.addr %s239, 8
      %s241 = scalar_lea.vmem %s6, %s240
      %p242 = scmp.lt.s32.totalorder %s17, 1
      %s243 = scalar_select %p242, %s17, 1
      %s244 = smul.addr %s243, 18
      %s245 = smul.addr %s244, 8
      %s246 = scalar_lea.vmem %s0, %s245
      %p247 = scmp.lt.s32.totalorder %s17, 1
      %s248 = scalar_select %p247, %s17, 1
      %s249 = smul.addr %s248, 32
      %s250 = smul.addr %s249, 8
      %s251 = scalar_lea.vmem %s6, %s250
      %v252 = vld [vmem:[%s246] sm:$0xff]
      %v253 = vld [vmem:[%s246 + $0x10] sm:$0xff]
      %v254 = vld [vmem:[%s246 + $0x20] sm:$0xff]
      %v255 = vld [vmem:[%s246 + $0x30] sm:$0xff]
      %v256 = vld [vmem:[%s246 + $0x40] sm:$0xff]
      %v257 = vld [vmem:[%s246 + $0x50] sm:$0xff]
      %v258 = vld [vmem:[%s246 + $0x60] sm:$0xff]
      %v259 = vld [vmem:[%s246 + $0x70] sm:$0xff]
      %v260 = vld [vmem:[%s246 + $0x1] sm:$0xff]
      %v261 = vld [vmem:[%s246 + $0x11] sm:$0xff]
      %v262 = vld [vmem:[%s246 + $0x21] sm:$0xff]
      %v263 = vld [vmem:[%s246 + $0x31] sm:$0xff]
      %v264 = vld [vmem:[%s246 + $0x41] sm:$0xff]
      %v265 = vld [vmem:[%s246 + $0x51] sm:$0xff]
      %v266 = vld [vmem:[%s246 + $0x61] sm:$0xff]
      %v267 = vld [vmem:[%s246 + $0x71] sm:$0xff]
      %s268 = scalar_lea.vmem %s246, 16
      %v269 = vld [vmem:[%s268] sm:$0xff]
      %v270 = vld [vmem:[%s268 + $0x10] sm:$0xff]
      %v271 = vld [vmem:[%s268 + $0x20] sm:$0xff]
      %v272 = vld [vmem:[%s268 + $0x30] sm:$0xff]
      %v273 = vld [vmem:[%s268 + $0x40] sm:$0xff]
      %v274 = vld [vmem:[%s268 + $0x50] sm:$0xff]
      %v275 = vld [vmem:[%s268 + $0x60] sm:$0xff]
      %v276 = vld [vmem:[%s268 + $0x70] sm:$0xff]
      %v277 = vld [vmem:[%s268 + $0x1] sm:$0xff]
      %v278 = vld [vmem:[%s268 + $0x11] sm:$0xff]
      %v279 = vld [vmem:[%s268 + $0x21] sm:$0xff]
      %v280 = vld [vmem:[%s268 + $0x31] sm:$0xff]
      %v281 = vld [vmem:[%s268 + $0x41] sm:$0xff]
      %v282 = vld [vmem:[%s268 + $0x51] sm:$0xff]
      %v283 = vld [vmem:[%s268 + $0x61] sm:$0xff]
      %v284 = vld [vmem:[%s268 + $0x71] sm:$0xff]
      %v285 = vld [vmem:[%s1] sm:$0xff]
      %v286 = vld [vmem:[%s1 + $0x8] sm:$0xff]
      %v287 = vld [vmem:[%s1 + $0x10] sm:$0xff]
      %v288 = vld [vmem:[%s1 + $0x18] sm:$0xff]
      %v289 = vld [vmem:[%s1 + $0x20] sm:$0xff]
      %v290 = vld [vmem:[%s1 + $0x28] sm:$0xff]
      %v291 = vld [vmem:[%s1 + $0x30] sm:$0xff]
      %v292 = vld [vmem:[%s1 + $0x38] sm:$0xff]
      %v293 = vld [vmem:[%s1 + $0x40] sm:$0xff]
      %v294 = vld [vmem:[%s1 + $0x48] sm:$0xff]
      %v295 = vld [vmem:[%s1 + $0x50] sm:$0xff]
      %v296 = vld [vmem:[%s1 + $0x58] sm:$0xff]
      %v297 = vld [vmem:[%s1 + $0x60] sm:$0xff]
      %v298 = vld [vmem:[%s1 + $0x68] sm:$0xff]
      %v299 = vld [vmem:[%s1 + $0x70] sm:$0xff]
      %v300 = vld [vmem:[%s1 + $0x78] sm:$0xff]
      %v301 = vld [vmem:[%s1 + $0x80] sm:$0xf]
      %v302 = vld [vmem:[%s1 + $0x88] sm:$0xf]
      %v303 = vld [vmem:[%s1 + $0x90] sm:$0xf]
      %v304 = vld [vmem:[%s1 + $0x98] sm:$0xf]
      %vm305 = vcmask 293888
      %v307 = vsel %vm305, %v252, 0
      %v310 = vsel %vm305, %v253, 0
      %v313 = vsel %vm305, %v254, 0
      %v316 = vsel %vm305, %v255, 0
      %v319 = vsel %vm305, %v256, 0
      %v322 = vsel %vm305, %v257, 0
      %v325 = vsel %vm305, %v258, 0
      %v328 = vsel %vm305, %v259, 0
      %vm330 = vcmask 1043456
      %v332 = vsel %vm330, %v301, 0
      %v335 = vsel %vm330, %v302, 0
      %v338 = vsel %vm330, %v303, 0
      %v341 = vsel %vm330, %v304, 0
      %343 = vmatpush.msra.mxu0 0.0
      %344 = vmatpush.msra.mxu0 0.0
      %345 = vmatpush.msra.mxu0 0.0
      %346 = vmatpush.msra.mxu0 0.0
      %347 = vmatpush.msra.mxu0 0.0
      %348 = vmatpush.msra.mxu0 0.0
      %349 = vmatpush.msra.mxu0 0.0
      %350 = vmatpush.msra.mxu0 0.0
      %351 = vmatpush.msra.mxu0 0.0
      %352 = vmatpush.msra.mxu0 0.0
      %353 = vmatpush.msra.mxu0 0.0
      %354 = vmatpush.msra.mxu0 %v332
      %355 = vmatpush.msra.mxu0 %v297
      %356 = vmatpush.msra.mxu0 %v293
      %357 = vmatpush.msra.mxu0 %v289
      %358 = vmatpush.msra.mxu0 %v285
      %359 = vmatmul.f32.gmra.mxu0 %v307
      %v360 = vpop.f32.mrf.mxu0
      %v361 = vadd.f32 0.0, %v360
      %362 = vmatmul.f32.gmra.mxu0 %v310
      %v363 = vpop.f32.mrf.mxu0
      %v364 = vadd.f32 0.0, %v363
      %365 = vmatmul.f32.gmra.mxu0 %v313
      %v366 = vpop.f32.mrf.mxu0
      %v367 = vadd.f32 0.0, %v366
      %368 = vmatmul.f32.gmra.mxu0 %v316
      %v369 = vpop.f32.mrf.mxu0
      %v370 = vadd.f32 0.0, %v369
      %371 = vmatmul.f32.gmra.mxu0 %v319
      %v372 = vpop.f32.mrf.mxu0
      %v373 = vadd.f32 0.0, %v372
      %374 = vmatmul.f32.gmra.mxu0 %v322
      %v375 = vpop.f32.mrf.mxu0
      %v376 = vadd.f32 0.0, %v375
      %377 = vmatmul.f32.gmra.mxu0 %v325
      %v378 = vpop.f32.mrf.mxu0
      %v379 = vadd.f32 0.0, %v378
      %380 = vmatmul.f32.gmra.mxu0 %v328
      %v381 = vpop.f32.mrf.mxu0
      %v382 = vadd.f32 0.0, %v381
      %383 = vdwg.mxu0
      %384 = vmatpush.msra.mxu0 0.0
      %385 = vmatpush.msra.mxu0 0.0
      %386 = vmatpush.msra.mxu0 0.0
      %387 = vmatpush.msra.mxu0 0.0
      %388 = vmatpush.msra.mxu0 0.0
      %389 = vmatpush.msra.mxu0 0.0
      %390 = vmatpush.msra.mxu0 0.0
      %391 = vmatpush.msra.mxu0 0.0
      %392 = vmatpush.msra.mxu0 0.0
      %393 = vmatpush.msra.mxu0 0.0
      %394 = vmatpush.msra.mxu0 0.0
      %395 = vmatpush.msra.mxu0 %v335
      %396 = vmatpush.msra.mxu0 %v298
      %397 = vmatpush.msra.mxu0 %v294
      %398 = vmatpush.msra.mxu0 %v290
      %399 = vmatpush.msra.mxu0 %v286
      %400 = vmatmul.f32.gmra.mxu0 %v307
      %v401 = vpop.f32.mrf.mxu0
      %v402 = vadd.f32 0.0, %v401
      %403 = vmatmul.f32.gmra.mxu0 %v310
      %v404 = vpop.f32.mrf.mxu0
      %v405 = vadd.f32 0.0, %v404
      %406 = vmatmul.f32.gmra.mxu0 %v313
      %v407 = vpop.f32.mrf.mxu0
      %v408 = vadd.f32 0.0, %v407
      %409 = vmatmul.f32.gmra.mxu0 %v316
      %v410 = vpop.f32.mrf.mxu0
      %v411 = vadd.f32 0.0, %v410
      %412 = vmatmul.f32.gmra.mxu0 %v319
      %v413 = vpop.f32.mrf.mxu0
      %v414 = vadd.f32 0.0, %v413
      %415 = vmatmul.f32.gmra.mxu0 %v322
      %v416 = vpop.f32.mrf.mxu0
      %v417 = vadd.f32 0.0, %v416
      %418 = vmatmul.f32.gmra.mxu0 %v325
      %v419 = vpop.f32.mrf.mxu0
      %v420 = vadd.f32 0.0, %v419
      %421 = vmatmul.f32.gmra.mxu0 %v328
      %v422 = vpop.f32.mrf.mxu0
      %v423 = vadd.f32 0.0, %v422
      %424 = vdwg.mxu0
      %425 = vmatpush.msra.mxu0 0.0
      %426 = vmatpush.msra.mxu0 0.0
      %427 = vmatpush.msra.mxu0 0.0
      %428 = vmatpush.msra.mxu0 0.0
      %429 = vmatpush.msra.mxu0 0.0
      %430 = vmatpush.msra.mxu0 0.0
      %431 = vmatpush.msra.mxu0 0.0
      %432 = vmatpush.msra.mxu0 0.0
      %433 = vmatpush.msra.mxu0 0.0
      %434 = vmatpush.msra.mxu0 0.0
      %435 = vmatpush.msra.mxu0 0.0
      %436 = vmatpush.msra.mxu0 %v338
      %437 = vmatpush.msra.mxu0 %v299
      %438 = vmatpush.msra.mxu0 %v295
      %439 = vmatpush.msra.mxu0 %v291
      %440 = vmatpush.msra.mxu0 %v287
      %441 = vmatmul.f32.gmra.mxu0 %v307
      %v442 = vpop.f32.mrf.mxu0
      %v443 = vadd.f32 0.0, %v442
      %444 = vmatmul.f32.gmra.mxu0 %v310
      %v445 = vpop.f32.mrf.mxu0
      %v446 = vadd.f32 0.0, %v445
      %447 = vmatmul.f32.gmra.mxu0 %v313
      %v448 = vpop.f32.mrf.mxu0
      %v449 = vadd.f32 0.0, %v448
      %450 = vmatmul.f32.gmra.mxu0 %v316
      %v451 = vpop.f32.mrf.mxu0
      %v452 = vadd.f32 0.0, %v451
      %453 = vmatmul.f32.gmra.mxu0 %v319
      %v454 = vpop.f32.mrf.mxu0
      %v455 = vadd.f32 0.0, %v454
      %456 = vmatmul.f32.gmra.mxu0 %v322
      %v457 = vpop.f32.mrf.mxu0
      %v458 = vadd.f32 0.0, %v457
      %459 = vmatmul.f32.gmra.mxu0 %v325
      %v460 = vpop.f32.mrf.mxu0
      %v461 = vadd.f32 0.0, %v460
      %462 = vmatmul.f32.gmra.mxu0 %v328
      %v463 = vpop.f32.mrf.mxu0
      %v464 = vadd.f32 0.0, %v463
      %465 = vdwg.mxu0
      %466 = vmatpush.msra.mxu0 0.0
      %467 = vmatpush.msra.mxu0 0.0
      %468 = vmatpush.msra.mxu0 0.0
      %469 = vmatpush.msra.mxu0 0.0
      %470 = vmatpush.msra.mxu0 0.0
      %471 = vmatpush.msra.mxu0 0.0
      %472 = vmatpush.msra.mxu0 0.0
      %473 = vmatpush.msra.mxu0 0.0
      %474 = vmatpush.msra.mxu0 0.0
      %475 = vmatpush.msra.mxu0 0.0
      %476 = vmatpush.msra.mxu0 0.0
      %477 = vmatpush.msra.mxu0 %v341
      %478 = vmatpush.msra.mxu0 %v300
      %479 = vmatpush.msra.mxu0 %v296
      %480 = vmatpush.msra.mxu0 %v292
      %481 = vmatpush.msra.mxu0 %v288
      %482 = vmatmul.f32.gmra.mxu0 %v307
      %v483 = vpop.f32.mrf.mxu0
      %v484 = vadd.f32 0.0, %v483
      %485 = vmatmul.f32.gmra.mxu0 %v310
      %v486 = vpop.f32.mrf.mxu0
      %v487 = vadd.f32 0.0, %v486
      %488 = vmatmul.f32.gmra.mxu0 %v313
      %v489 = vpop.f32.mrf.mxu0
      %v490 = vadd.f32 0.0, %v489
      %491 = vmatmul.f32.gmra.mxu0 %v316
      %v492 = vpop.f32.mrf.mxu0
      %v493 = vadd.f32 0.0, %v492
      %494 = vmatmul.f32.gmra.mxu0 %v319
      %v495 = vpop.f32.mrf.mxu0
      %v496 = vadd.f32 0.0, %v495
      %497 = vmatmul.f32.gmra.mxu0 %v322
      %v498 = vpop.f32.mrf.mxu0
      %v499 = vadd.f32 0.0, %v498
      %500 = vmatmul.f32.gmra.mxu0 %v325
      %v501 = vpop.f32.mrf.mxu0
      %v502 = vadd.f32 0.0, %v501
      %503 = vmatmul.f32.gmra.mxu0 %v328
      %v504 = vpop.f32.mrf.mxu0
      %v505 = vadd.f32 0.0, %v504
      %506 = vdwg.mxu0
      %v507 = vld [vmem:[%s2] sm:$0xff]
      %v508 = vld [vmem:[%s2 + $0x8] sm:$0xff]
      %v509 = vld [vmem:[%s2 + $0x10] sm:$0xff]
      %v510 = vld [vmem:[%s2 + $0x18] sm:$0xff]
      %v511 = vld [vmem:[%s2 + $0x20] sm:$0xff]
      %v512 = vld [vmem:[%s2 + $0x28] sm:$0xff]
      %v513 = vld [vmem:[%s2 + $0x30] sm:$0xff]
      %v514 = vld [vmem:[%s2 + $0x38] sm:$0xff]
      %v515 = vld [vmem:[%s2 + $0x40] sm:$0xf]
      %v516 = vld [vmem:[%s2 + $0x48] sm:$0xf]
      %v518 = vsel %vm305, %v260, 0
      %v521 = vsel %vm305, %v261, 0
      %v524 = vsel %vm305, %v262, 0
      %v527 = vsel %vm305, %v263, 0
      %v530 = vsel %vm305, %v264, 0
      %v533 = vsel %vm305, %v265, 0
      %v536 = vsel %vm305, %v266, 0
      %v539 = vsel %vm305, %v267, 0
      %v542 = vsel %vm330, %v515, 0
      %v545 = vsel %vm330, %v516, 0
      %547 = vmatpush.msra.mxu0 0.0
      %548 = vmatpush.msra.mxu0 0.0
      %549 = vmatpush.msra.mxu0 0.0
      %550 = vmatpush.msra.mxu0 0.0
      %551 = vmatpush.msra.mxu0 0.0
      %552 = vmatpush.msra.mxu0 0.0
      %553 = vmatpush.msra.mxu0 0.0
      %554 = vmatpush.msra.mxu0 0.0
      %555 = vmatpush.msra.mxu0 0.0
      %556 = vmatpush.msra.mxu0 0.0
      %557 = vmatpush.msra.mxu0 0.0
      %558 = vmatpush.msra.mxu0 %v542
      %559 = vmatpush.msra.mxu0 %v513
      %560 = vmatpush.msra.mxu0 %v511
      %561 = vmatpush.msra.mxu0 %v509
      %562 = vmatpush.msra.mxu0 %v507
      %563 = vmatmul.f32.gmra.mxu0 %v518
      %v564 = vpop.f32.mrf.mxu0
      %v565 = vadd.f32 0.0, %v564
      %566 = vmatmul.f32.gmra.mxu0 %v521
      %v567 = vpop.f32.mrf.mxu0
      %v568 = vadd.f32 0.0, %v567
      %569 = vmatmul.f32.gmra.mxu0 %v524
      %v570 = vpop.f32.mrf.mxu0
      %v571 = vadd.f32 0.0, %v570
      %572 = vmatmul.f32.gmra.mxu0 %v527
      %v573 = vpop.f32.mrf.mxu0
      %v574 = vadd.f32 0.0, %v573
      %575 = vmatmul.f32.gmra.mxu0 %v530
      %v576 = vpop.f32.mrf.mxu0
      %v577 = vadd.f32 0.0, %v576
      %578 = vmatmul.f32.gmra.mxu0 %v533
      %v579 = vpop.f32.mrf.mxu0
      %v580 = vadd.f32 0.0, %v579
      %581 = vmatmul.f32.gmra.mxu0 %v536
      %v582 = vpop.f32.mrf.mxu0
      %v583 = vadd.f32 0.0, %v582
      %584 = vmatmul.f32.gmra.mxu0 %v539
      %v585 = vpop.f32.mrf.mxu0
      %v586 = vadd.f32 0.0, %v585
      %587 = vdwg.mxu0
      %588 = vmatpush.msra.mxu0 0.0
      %589 = vmatpush.msra.mxu0 0.0
      %590 = vmatpush.msra.mxu0 0.0
      %591 = vmatpush.msra.mxu0 0.0
      %592 = vmatpush.msra.mxu0 0.0
      %593 = vmatpush.msra.mxu0 0.0
      %594 = vmatpush.msra.mxu0 0.0
      %595 = vmatpush.msra.mxu0 0.0
      %596 = vmatpush.msra.mxu0 0.0
      %597 = vmatpush.msra.mxu0 0.0
      %598 = vmatpush.msra.mxu0 0.0
      %599 = vmatpush.msra.mxu0 %v545
      %600 = vmatpush.msra.mxu0 %v514
      %601 = vmatpush.msra.mxu0 %v512
      %602 = vmatpush.msra.mxu0 %v510
      %603 = vmatpush.msra.mxu0 %v508
      %604 = vmatmul.f32.gmra.mxu0 %v518
      %v605 = vpop.f32.mrf.mxu0
      %v606 = vadd.f32 0.0, %v605
      %607 = vmatmul.f32.gmra.mxu0 %v521
      %v608 = vpop.f32.mrf.mxu0
      %v609 = vadd.f32 0.0, %v608
      %610 = vmatmul.f32.gmra.mxu0 %v524
      %v611 = vpop.f32.mrf.mxu0
      %v612 = vadd.f32 0.0, %v611
      %613 = vmatmul.f32.gmra.mxu0 %v527
      %v614 = vpop.f32.mrf.mxu0
      %v615 = vadd.f32 0.0, %v614
      %616 = vmatmul.f32.gmra.mxu0 %v530
      %v617 = vpop.f32.mrf.mxu0
      %v618 = vadd.f32 0.0, %v617
      %619 = vmatmul.f32.gmra.mxu0 %v533
      %v620 = vpop.f32.mrf.mxu0
      %v621 = vadd.f32 0.0, %v620
      %622 = vmatmul.f32.gmra.mxu0 %v536
      %v623 = vpop.f32.mrf.mxu0
      %v624 = vadd.f32 0.0, %v623
      %625 = vmatmul.f32.gmra.mxu0 %v539
      %v626 = vpop.f32.mrf.mxu0
      %v627 = vadd.f32 0.0, %v626
      %628 = vdwg.mxu0
      %v629 = vld [vmem:[%s3] sm:$0xff]
      %v630 = vld [vmem:[%s3 + $0x8] sm:$0xff]
      %v631 = vld [vmem:[%s3 + $0x10] sm:$0xff]
      %v632 = vld [vmem:[%s3 + $0x18] sm:$0xff]
      %v633 = vld [vmem:[%s3 + $0x20] sm:$0xff]
      %v634 = vld [vmem:[%s3 + $0x28] sm:$0xff]
      %v635 = vld [vmem:[%s3 + $0x30] sm:$0xff]
      %v636 = vld [vmem:[%s3 + $0x38] sm:$0xff]
      %v637 = vld [vmem:[%s3 + $0x40] sm:$0xf]
      %v638 = vld [vmem:[%s3 + $0x48] sm:$0xf]
      %v640 = vsel %vm305, %v269, 0
      %v643 = vsel %vm305, %v270, 0
      %v646 = vsel %vm305, %v271, 0
      %v649 = vsel %vm305, %v272, 0
      %v652 = vsel %vm305, %v273, 0
      %v655 = vsel %vm305, %v274, 0
      %v658 = vsel %vm305, %v275, 0
      %v661 = vsel %vm305, %v276, 0
      %v664 = vsel %vm330, %v637, 0
      %v667 = vsel %vm330, %v638, 0
      %669 = vmatpush.msra.mxu0 0.0
      %670 = vmatpush.msra.mxu0 0.0
      %671 = vmatpush.msra.mxu0 0.0
      %672 = vmatpush.msra.mxu0 0.0
      %673 = vmatpush.msra.mxu0 0.0
      %674 = vmatpush.msra.mxu0 0.0
      %675 = vmatpush.msra.mxu0 0.0
      %676 = vmatpush.msra.mxu0 0.0
      %677 = vmatpush.msra.mxu0 0.0
      %678 = vmatpush.msra.mxu0 0.0
      %679 = vmatpush.msra.mxu0 0.0
      %680 = vmatpush.msra.mxu0 %v664
      %681 = vmatpush.msra.mxu0 %v635
      %682 = vmatpush.msra.mxu0 %v633
      %683 = vmatpush.msra.mxu0 %v631
      %684 = vmatpush.msra.mxu0 %v629
      %685 = vmatmul.f32.gmra.mxu0 %v640
      %v686 = vpop.f32.mrf.mxu0
      %v687 = vadd.f32 0.0, %v686
      %688 = vmatmul.f32.gmra.mxu0 %v643
      %v689 = vpop.f32.mrf.mxu0
      %v690 = vadd.f32 0.0, %v689
      %691 = vmatmul.f32.gmra.mxu0 %v646
      %v692 = vpop.f32.mrf.mxu0
      %v693 = vadd.f32 0.0, %v692
      %694 = vmatmul.f32.gmra.mxu0 %v649
      %v695 = vpop.f32.mrf.mxu0
      %v696 = vadd.f32 0.0, %v695
      %697 = vmatmul.f32.gmra.mxu0 %v652
      %v698 = vpop.f32.mrf.mxu0
      %v699 = vadd.f32 0.0, %v698
      %700 = vmatmul.f32.gmra.mxu0 %v655
      %v701 = vpop.f32.mrf.mxu0
      %v702 = vadd.f32 0.0, %v701
      %703 = vmatmul.f32.gmra.mxu0 %v658
      %v704 = vpop.f32.mrf.mxu0
      %v705 = vadd.f32 0.0, %v704
      %706 = vmatmul.f32.gmra.mxu0 %v661
      %v707 = vpop.f32.mrf.mxu0
      %v708 = vadd.f32 0.0, %v707
      %709 = vdwg.mxu0
      %710 = vmatpush.msra.mxu0 0.0
      %711 = vmatpush.msra.mxu0 0.0
      %712 = vmatpush.msra.mxu0 0.0
      %713 = vmatpush.msra.mxu0 0.0
      %714 = vmatpush.msra.mxu0 0.0
      %715 = vmatpush.msra.mxu0 0.0
      %716 = vmatpush.msra.mxu0 0.0
      %717 = vmatpush.msra.mxu0 0.0
      %718 = vmatpush.msra.mxu0 0.0
      %719 = vmatpush.msra.mxu0 0.0
      %720 = vmatpush.msra.mxu0 0.0
      %721 = vmatpush.msra.mxu0 %v667
      %722 = vmatpush.msra.mxu0 %v636
      %723 = vmatpush.msra.mxu0 %v634
      %724 = vmatpush.msra.mxu0 %v632
      %725 = vmatpush.msra.mxu0 %v630
      %726 = vmatmul.f32.gmra.mxu0 %v640
      %v727 = vpop.f32.mrf.mxu0
      %v728 = vadd.f32 0.0, %v727
      %729 = vmatmul.f32.gmra.mxu0 %v643
      %v730 = vpop.f32.mrf.mxu0
      %v731 = vadd.f32 0.0, %v730
      %732 = vmatmul.f32.gmra.mxu0 %v646
      %v733 = vpop.f32.mrf.mxu0
      %v734 = vadd.f32 0.0, %v733
      %735 = vmatmul.f32.gmra.mxu0 %v649
      %v736 = vpop.f32.mrf.mxu0
      %v737 = vadd.f32 0.0, %v736
      %738 = vmatmul.f32.gmra.mxu0 %v652
      %v739 = vpop.f32.mrf.mxu0
      %v740 = vadd.f32 0.0, %v739
      %741 = vmatmul.f32.gmra.mxu0 %v655
      %v742 = vpop.f32.mrf.mxu0
      %v743 = vadd.f32 0.0, %v742
      %744 = vmatmul.f32.gmra.mxu0 %v658
      %v745 = vpop.f32.mrf.mxu0
      %v746 = vadd.f32 0.0, %v745
      %747 = vmatmul.f32.gmra.mxu0 %v661
      %v748 = vpop.f32.mrf.mxu0
      %v749 = vadd.f32 0.0, %v748
      %750 = vdwg.mxu0
      %v751 = vld [vmem:[%s4] sm:$0xff]
      %v752 = vld [vmem:[%s4 + $0x8] sm:$0xff]
      %v753 = vld [vmem:[%s4 + $0x10] sm:$0xff]
      %v754 = vld [vmem:[%s4 + $0x18] sm:$0xff]
      %v755 = vld [vmem:[%s4 + $0x20] sm:$0xf]
      %v757 = vsel %vm305, %v277, 0
      %v760 = vsel %vm305, %v278, 0
      %v763 = vsel %vm305, %v279, 0
      %v766 = vsel %vm305, %v280, 0
      %v769 = vsel %vm305, %v281, 0
      %v772 = vsel %vm305, %v282, 0
      %v775 = vsel %vm305, %v283, 0
      %v778 = vsel %vm305, %v284, 0
      %v781 = vsel %vm330, %v755, 0
      %783 = vmatpush.msra.mxu0 0.0
      %784 = vmatpush.msra.mxu0 0.0
      %785 = vmatpush.msra.mxu0 0.0
      %786 = vmatpush.msra.mxu0 0.0
      %787 = vmatpush.msra.mxu0 0.0
      %788 = vmatpush.msra.mxu0 0.0
      %789 = vmatpush.msra.mxu0 0.0
      %790 = vmatpush.msra.mxu0 0.0
      %791 = vmatpush.msra.mxu0 0.0
      %792 = vmatpush.msra.mxu0 0.0
      %793 = vmatpush.msra.mxu0 0.0
      %794 = vmatpush.msra.mxu0 %v781
      %795 = vmatpush.msra.mxu0 %v754
      %796 = vmatpush.msra.mxu0 %v753
      %797 = vmatpush.msra.mxu0 %v752
      %798 = vmatpush.msra.mxu0 %v751
      %799 = vmatmul.f32.gmra.mxu0 %v757
      %v800 = vpop.f32.mrf.mxu0
      %v801 = vadd.f32 0.0, %v800
      %802 = vmatmul.f32.gmra.mxu0 %v760
      %v803 = vpop.f32.mrf.mxu0
      %v804 = vadd.f32 0.0, %v803
      %805 = vmatmul.f32.gmra.mxu0 %v763
      %v806 = vpop.f32.mrf.mxu0
      %v807 = vadd.f32 0.0, %v806
      %808 = vmatmul.f32.gmra.mxu0 %v766
      %v809 = vpop.f32.mrf.mxu0
      %v810 = vadd.f32 0.0, %v809
      %811 = vmatmul.f32.gmra.mxu0 %v769
      %v812 = vpop.f32.mrf.mxu0
      %v813 = vadd.f32 0.0, %v812
      %814 = vmatmul.f32.gmra.mxu0 %v772
      %v815 = vpop.f32.mrf.mxu0
      %v816 = vadd.f32 0.0, %v815
      %817 = vmatmul.f32.gmra.mxu0 %v775
      %v818 = vpop.f32.mrf.mxu0
      %v819 = vadd.f32 0.0, %v818
      %820 = vmatmul.f32.gmra.mxu0 %v778
      %v821 = vpop.f32.mrf.mxu0
      %v822 = vadd.f32 0.0, %v821
      %823 = vdwg.mxu0
      %v824 = vadd.f32 %v402, %v565
      %v825 = vadd.f32 %v405, %v568
      %v826 = vadd.f32 %v408, %v571
      %v827 = vadd.f32 %v411, %v574
      %v828 = vadd.f32 %v414, %v577
      %v829 = vadd.f32 %v417, %v580
      %v830 = vadd.f32 %v420, %v583
      %v831 = vadd.f32 %v423, %v586
      %v832 = vadd.f32 %v443, %v687
      %v833 = vadd.f32 %v446, %v690
      %v834 = vadd.f32 %v449, %v693
      %v835 = vadd.f32 %v452, %v696
      %v836 = vadd.f32 %v455, %v699
      %v837 = vadd.f32 %v458, %v702
      %v838 = vadd.f32 %v461, %v705
      %v839 = vadd.f32 %v464, %v708
      %v840 = vadd.f32 %v484, %v606
      %v841 = vadd.f32 %v487, %v609
      %v842 = vadd.f32 %v490, %v612
      %v843 = vadd.f32 %v493, %v615
      %v844 = vadd.f32 %v496, %v618
      %v845 = vadd.f32 %v499, %v621
      %v846 = vadd.f32 %v502, %v624
      %v847 = vadd.f32 %v505, %v627
      %v848 = vadd.f32 %v840, %v728
      %v849 = vadd.f32 %v841, %v731
      %v850 = vadd.f32 %v842, %v734
      %v851 = vadd.f32 %v843, %v737
      %v852 = vadd.f32 %v844, %v740
      %v853 = vadd.f32 %v845, %v743
      %v854 = vadd.f32 %v846, %v746
      %v855 = vadd.f32 %v847, %v749
      %v856 = vadd.f32 %v848, %v801
      %v857 = vadd.f32 %v849, %v804
      %v858 = vadd.f32 %v850, %v807
      %v859 = vadd.f32 %v851, %v810
      %v860 = vadd.f32 %v852, %v813
      %v861 = vadd.f32 %v853, %v816
      %v862 = vadd.f32 %v854, %v819
      %v863 = vadd.f32 %v855, %v822
      %v864 = vld [vmem:[%s5] sm:$0x1]
      %v866 = vperm.slane %v864, 0
      %v868 = vadd.f32 %v361, %v866
      %v869 = vadd.f32 %v364, %v866
      %v870 = vadd.f32 %v367, %v866
      %v871 = vadd.f32 %v370, %v866
      %v872 = vadd.f32 %v373, %v866
      %v873 = vadd.f32 %v376, %v866
      %v874 = vadd.f32 %v379, %v866
      %v875 = vadd.f32 %v382, %v866
      %v876 = vmax.f32 %v868, 0.0
      %v877 = vmax.f32 %v869, 0.0
      %v878 = vmax.f32 %v870, 0.0
      %v879 = vmax.f32 %v871, 0.0
      %v880 = vmax.f32 %v872, 0.0
      %v881 = vmax.f32 %v873, 0.0
      %v882 = vmax.f32 %v874, 0.0
      %v883 = vmax.f32 %v875, 0.0
      %884 = vst [vmem:[%s251] sm:$0xff] %v876
      %885 = vst [vmem:[%s251 + $0x20] sm:$0xff] %v877
      %886 = vst [vmem:[%s251 + $0x40] sm:$0xff] %v878
      %887 = vst [vmem:[%s251 + $0x60] sm:$0xff] %v879
      %888 = vst [vmem:[%s251 + $0x80] sm:$0xff] %v880
      %889 = vst [vmem:[%s251 + $0xa0] sm:$0xff] %v881
      %890 = vst [vmem:[%s251 + $0xc0] sm:$0xff] %v882
      %891 = vst [vmem:[%s251 + $0xe0] sm:$0xff] %v883
      %v892 = vadd.f32 %v824, %v866
      %v893 = vadd.f32 %v825, %v866
      %v894 = vadd.f32 %v826, %v866
      %v895 = vadd.f32 %v827, %v866
      %v896 = vadd.f32 %v828, %v866
      %v897 = vadd.f32 %v829, %v866
      %v898 = vadd.f32 %v830, %v866
      %v899 = vadd.f32 %v831, %v866
      %v900 = vmax.f32 %v892, 0.0
      %v901 = vmax.f32 %v893, 0.0
      %v902 = vmax.f32 %v894, 0.0
      %v903 = vmax.f32 %v895, 0.0
      %v904 = vmax.f32 %v896, 0.0
      %v905 = vmax.f32 %v897, 0.0
      %v906 = vmax.f32 %v898, 0.0
      %v907 = vmax.f32 %v899, 0.0
      %908 = vst [vmem:[%s251 + $0x8] sm:$0xff] %v900
      %909 = vst [vmem:[%s251 + $0x28] sm:$0xff] %v901
      %910 = vst [vmem:[%s251 + $0x48] sm:$0xff] %v902
      %911 = vst [vmem:[%s251 + $0x68] sm:$0xff] %v903
      %912 = vst [vmem:[%s251 + $0x88] sm:$0xff] %v904
      %913 = vst [vmem:[%s251 + $0xa8] sm:$0xff] %v905
      %914 = vst [vmem:[%s251 + $0xc8] sm:$0xff] %v906
      %915 = vst [vmem:[%s251 + $0xe8] sm:$0xff] %v907
      %v916 = vadd.f32 %v832, %v866
      %v917 = vadd.f32 %v833, %v866
      %v918 = vadd.f32 %v834, %v866
      %v919 = vadd.f32 %v835, %v866
      %v920 = vadd.f32 %v836, %v866
      %v921 = vadd.f32 %v837, %v866
      %v922 = vadd.f32 %v838, %v866
      %v923 = vadd.f32 %v839, %v866
      %v924 = vmax.f32 %v916, 0.0
      %v925 = vmax.f32 %v917, 0.0
      %v926 = vmax.f32 %v918, 0.0
      %v927 = vmax.f32 %v919, 0.0
      %v928 = vmax.f32 %v920, 0.0
      %v929 = vmax.f32 %v921, 0.0
      %v930 = vmax.f32 %v922, 0.0
      %v931 = vmax.f32 %v923, 0.0
      %s932 = scalar_lea.vmem %s251, 16
      %933 = vst [vmem:[%s932] sm:$0xff] %v924
      %934 = vst [vmem:[%s932 + $0x20] sm:$0xff] %v925
      %935 = vst [vmem:[%s932 + $0x40] sm:$0xff] %v926
      %936 = vst [vmem:[%s932 + $0x60] sm:$0xff] %v927
      %937 = vst [vmem:[%s932 + $0x80] sm:$0xff] %v928
      %938 = vst [vmem:[%s932 + $0xa0] sm:$0xff] %v929
      %939 = vst [vmem:[%s932 + $0xc0] sm:$0xff] %v930
      %940 = vst [vmem:[%s932 + $0xe0] sm:$0xff] %v931
      %v941 = vadd.f32 %v856, %v866
      %v942 = vadd.f32 %v857, %v866
      %v943 = vadd.f32 %v858, %v866
      %v944 = vadd.f32 %v859, %v866
      %v945 = vadd.f32 %v860, %v866
      %v946 = vadd.f32 %v861, %v866
      %v947 = vadd.f32 %v862, %v866
      %v948 = vadd.f32 %v863, %v866
      %v949 = vmax.f32 %v941, 0.0
      %v950 = vmax.f32 %v942, 0.0
      %v951 = vmax.f32 %v943, 0.0
      %v952 = vmax.f32 %v944, 0.0
      %v953 = vmax.f32 %v945, 0.0
      %v954 = vmax.f32 %v946, 0.0
      %v955 = vmax.f32 %v947, 0.0
      %v956 = vmax.f32 %v948, 0.0
      %957 = vst [vmem:[%s932 + $0x8] sm:$0xff] %v949
      %958 = vst [vmem:[%s932 + $0x28] sm:$0xff] %v950
      %959 = vst [vmem:[%s932 + $0x48] sm:$0xff] %v951
      %960 = vst [vmem:[%s932 + $0x68] sm:$0xff] %v952
      %961 = vst [vmem:[%s932 + $0x88] sm:$0xff] %v953
      %962 = vst [vmem:[%s932 + $0xa8] sm:$0xff] %v954
      %963 = vst [vmem:[%s932 + $0xc8] sm:$0xff] %v955
      %964 = vst [vmem:[%s932 + $0xe8] sm:$0xff] %v956
      %p965 = scmp.lt.s32.totalorder %s17, 1
      %s966 = scalar_select %p965, %s17, 1
      %s967 = smul.addr %s966, 32
      %s968 = smul.addr %s967, 8
      %s969 = scalar_lea.vmem %s6, %s968
      // Predicated region
      $region45: #{deconv3d_block.1} parent=43 // pred_check
        %p970 = pneg %p166
      $region46: #{deconv3d_block.1} parent=43 // pred_check_branch
        %972 = sbr.rel (%p970) target = $region48
      $region47: #{deconv3d_block.1} parent=43 // pred_region
        _
      $region48: #{deconv3d_block.1} parent=43 // pred_fallthru
        _
    $region44: #{deconv3d_block.1} parent=5 // pred_fallthru
      _
    %p973 = scmp.le.s32.totalorder 2, %s12
    // Predicated region
    $region49: #{deconv3d_block.1} parent=5 // pred_check
      %p974 = pneg %p973
    $region50: #{deconv3d_block.1} parent=5 // pred_check_branch
      %976 = sbr.rel (%p974) target = $region52
    $region51: #{deconv3d_block.1} parent=5 // pred_region
      %s977 = ssub.s32 %s12, 2
      // Predicated region
      $region53: #{deconv3d_block.1} parent=51 // pred_check
        %p978 = pneg %p172
      $region54: #{deconv3d_block.1} parent=51 // pred_check_branch
        %980 = sbr.rel (%p978) target = $region56
      $region55: #{deconv3d_block.1} parent=51 // pred_region
        %p981 = scmp.lt.s32.totalorder %s18, 1
        %s982 = scalar_select %p981, %s18, 1
        %s983 = smul.addr %s982, 32
        %s984 = smul.addr %s983, 8
        %s985 = scalar_lea.vmem %s6, %s984
      $region56: #{deconv3d_block.1} parent=51 // pred_fallthru
        _
    $region52: #{deconv3d_block.1} parent=5 // pred_fallthru
      _
  $region6: #{deconv3d_block.1} parent=0 // loop_footer
    %s16 = sadd.s32 1, %s12
  $region7: #{deconv3d_block.1} parent=0 // loop_footer_branch
    %11 = sbr.rel target = $region3
  $region8: #{deconv3d_block.1} parent=0 // loop_exit
    _

</llo_original>
